<compile_context>
chip_gen: v6e
topology: v6e:2x2x1
jax: 0.10.0
libtpu: 0.0.40
codegen_flags: <defaults>
</compile_context>

<pallas_src>
import math
import functools

import numpy as np
import jax
import jax.numpy as jnp
from jax import lax
from jax.experimental import pallas as pl
from jax.experimental.pallas import tpu as pltpu


# ---------------------------------------------------------------------------
# Host-side construction of the folded pad+filter+stride matrices
# ---------------------------------------------------------------------------
def _binomial_filter(filt_size):
    return np.array([math.comb(filt_size - 1, k) for k in range(filt_size)],
                    dtype=np.float64)


def _pad_index(p, size, pad_left, pad_type):
    """Source index in [0, size) for padded position p (-1 means zero padding)."""
    idx = p - pad_left
    if 0 <= idx < size:
        return idx
    if pad_type in ("refl", "reflect"):          # nn.ReflectionPad2d (no edge repeat)
        if idx < 0:
            idx = -idx
        if idx > size - 1:
            idx = 2 * (size - 1) - idx
        return idx
    if pad_type in ("repl", "replicate"):        # nn.ReplicationPad2d
        return min(max(idx, 0), size - 1)
    if pad_type == "zero":                       # nn.ZeroPad2d
        return -1
    raise ValueError("Pad type [%s] not recognized" % pad_type)


def _filter_matrix(size, filt_size, stride, pad_left, pad_right, pad_type):
    """(out, size) matrix that applies pad + 1-D binomial filter + stride as one matmul."""
    a = _binomial_filter(filt_size)
    a = a / a.sum()                              # (a/sum)⊗(a/sum) == outer(a,a)/sum(outer)
    padded = size + pad_left + pad_right
    out = (padded - filt_size) // stride + 1
    m = np.zeros((out, size), dtype=np.float64)
    for i in range(out):
        for k in range(filt_size):
            src = _pad_index(i * stride + k, size, pad_left, pad_type)
            if src >= 0:
                m[i, src] += a[k]
    return m.astype(np.float32), out


# ---------------------------------------------------------------------------
# Pallas kernel: one batch element, both separable passes fused, all in VMEM
# ---------------------------------------------------------------------------
def _downsample_kernel(ah_ref, awt_ref, x_ref, o_ref):
    # ah_ref : (Hout, H)        vertical   pad+taps+stride matrix
    # awt_ref: (W, Wout)        horizontal pad+taps+stride matrix (transposed)
    # x_ref  : (1, C*H, W)      one batch element, channel-major rows (natural NCHW reshape)
    # o_ref  : (1, C, Hout, Wout)
    C = o_ref.shape[1]
    H = x_ref.shape[1] // C

    # Horizontal blur + stride for ALL channels in a single MXU matmul.
    h = jnp.dot(x_ref[0], awt_ref[...],
                preferred_element_type=jnp.float32)          # (C*H, Wout)

    ah = ah_ref[...]                                         # (Hout, H)
    # Vertical blur + stride, static unroll over channels (sublane-aligned value slices).
    for c in range(C):
        o_ref[0, c] = jnp.dot(ah, h[c * H:(c + 1) * H, :],
                              preferred_element_type=jnp.float32)   # (Hout, Wout)


# ---------------------------------------------------------------------------
# Wrapper (matches Downsample.forward semantics)
# ---------------------------------------------------------------------------
def downsample(x, *, filt_size=3, stride=2, pad_type="reflect", pad_off=0):
    N, C, H, W = x.shape
    pad_l = (filt_size - 1) // 2 + pad_off
    pad_r = int(math.ceil((filt_size - 1) / 2.0)) + pad_off
    x = x.astype(jnp.float32)

    if filt_size == 1:
        # No blur filter: pure strided slicing (indexing glue, no kernel needed).
        if pad_off == 0:
            return x[:, :, ::stride, ::stride]
        mode = {"reflect": "reflect", "refl": "reflect",
                "repl": "edge", "replicate": "edge", "zero": "constant"}[pad_type]
        xp = jnp.pad(x, ((0, 0), (0, 0), (pad_l, pad_r), (pad_l, pad_r)), mode=mode)
        return xp[:, :, ::stride, ::stride]

    ah_np, Hout = _filter_matrix(H, filt_size, stride, pad_l, pad_r, pad_type)
    aw_np, Wout = _filter_matrix(W, filt_size, stride, pad_l, pad_r, pad_type)
    ah = jnp.asarray(ah_np)             # (Hout, H)
    awt = jnp.asarray(aw_np.T)          # (W, Wout)

    x2d = x.reshape(N, C * H, W)        # contiguous reshape of NCHW, no transpose / no pad copy

    out = pl.pallas_call(
        _downsample_kernel,
        out_shape=jax.ShapeDtypeStruct((N, C, Hout, Wout), jnp.float32),
        grid=(N,),
        in_specs=[
            pl.BlockSpec((Hout, H), lambda n: (0, 0)),
            pl.BlockSpec((W, Wout), lambda n: (0, 0)),
            pl.BlockSpec((1, C * H, W), lambda n: (n, 0, 0)),
        ],
        out_specs=pl.BlockSpec((1, C, Hout, Wout), lambda n: (n, 0, 0, 0)),
        compiler_params=pltpu.CompilerParams(dimension_semantics=("parallel",)),
    )(ah, awt, x2d)
    return out


# ---------------------------------------------------------------------------
# Pure-JAX reference mirroring the PyTorch forward (pad layer + grouped conv2d)
# ---------------------------------------------------------------------------
def reference(x, *, filt_size=3, stride=2, pad_type="reflect", pad_off=0):
    N, C, H, W = x.shape
    pad_l = (filt_size - 1) // 2 + pad_off
    pad_r = int(math.ceil((filt_size - 1) / 2.0)) + pad_off
    mode = {"reflect": "reflect", "refl": "reflect",
            "repl": "edge", "replicate": "edge", "zero": "constant"}[pad_type]
    xp = jnp.pad(x, ((0, 0), (0, 0), (pad_l, pad_r), (pad_l, pad_r)), mode=mode)
    if filt_size == 1:
        return xp[:, :, ::stride, ::stride] if pad_off else x[:, :, ::stride, ::stride]
    a = _binomial_filter(filt_size)
    f2 = np.outer(a, a)
    f2 = f2 / f2.sum()
    w = jnp.asarray(np.tile(f2[None, None], (C, 1, 1, 1)), jnp.float32)  # (C,1,f,f)
    return lax.conv_general_dilated(
        xp, w, window_strides=(stride, stride), padding="VALID",
        dimension_numbers=("NCHW", "OIHW", "NCHW"), feature_group_count=C)


if __name__ == "__main__":
    key = jax.random.PRNGKey(0)
    N, C, H, W = 2, 4, 16, 16
    x = jax.random.normal(key, (N, C, H, W), jnp.float32)

    out = jax.block_until_ready(downsample(x))      # defaults: reflect, filt=3, stride=2
    ref = jax.block_until_ready(reference(x))

    assert out.shape == (N, C, H // 2, W // 2) and out.dtype == jnp.float32
    err = float(jnp.max(jnp.abs(out - ref)))
    assert jnp.allclose(out, ref, atol=1e-4, rtol=1e-4), f"max abs err {err}"

    print("KERNEL_OK")
</pallas_src>

<mosaic_0001>
module attributes {stable_mosaic.version = 11 : i64} {
  func.func @_downsample_kernel(%arg0: i32, %arg1: memref<8x16xf32, #tpu.memory_space<vmem>>, %arg2: memref<16x8xf32, #tpu.memory_space<vmem>>, %arg3: memref<1x64x16xf32, #tpu.memory_space<vmem>>, %arg4: memref<1x4x8x8xf32, #tpu.memory_space<vmem>>) attributes {dimension_semantics = [#tpu.dimension_semantics<parallel>], iteration_bounds = array<i64: 2>, scalar_prefetch = 0 : i64, scratch_operands = 0 : i64, tpu.core_type = #tpu.core_type<tc>, window_params = [{pipeline_mode = #tpu.pipeline_mode<synchronous>, transform_indices = @transform_0, window_bounds = array<i64: 8, 16>}, {pipeline_mode = #tpu.pipeline_mode<synchronous>, transform_indices = @transform_1, window_bounds = array<i64: 16, 8>}, {transform_indices = @transform_2, window_bounds = array<i64: 1, 64, 16>}, {transform_indices = @transform_3, window_bounds = array<i64: 1, 4, 8, 8>}]} {
    %c0 = arith.constant 0 : index
    %c0_0 = arith.constant 0 : index
    %c0_1 = arith.constant 0 : index
    %0 = vector.load %arg3[%c0, %c0_0, %c0_1] : memref<1x64x16xf32, #tpu.memory_space<vmem>>, vector<1x64x16xf32>
    %1 = vector.shape_cast %0 : vector<1x64x16xf32> to vector<64x16xf32>
    %c0_2 = arith.constant 0 : index
    %c0_3 = arith.constant 0 : index
    %2 = vector.load %arg2[%c0_2, %c0_3] : memref<16x8xf32, #tpu.memory_space<vmem>>, vector<16x8xf32>
    %cst = arith.constant dense<0.000000e+00> : vector<64x8xf32>
    %3 = tpu.matmul %1, %2, %cst {dimension_numbers = #tpu.dot_dimension_numbers<[1], [0], [0], [1], [0, 0, 1, 1], [], []>} : vector<64x16xf32>, vector<16x8xf32>, vector<64x8xf32> -> vector<64x8xf32>
    %c0_4 = arith.constant 0 : index
    %c0_5 = arith.constant 0 : index
    %4 = vector.load %arg1[%c0_4, %c0_5] : memref<8x16xf32, #tpu.memory_space<vmem>>, vector<8x16xf32>
    %5 = vector.extract_strided_slice %3 {offsets = [0, 0], sizes = [16, 8], strides = [1, 1]} : vector<64x8xf32> to vector<16x8xf32>
    %cst_6 = arith.constant dense<0.000000e+00> : vector<8x8xf32>
    %6 = tpu.matmul %4, %5, %cst_6 {dimension_numbers = #tpu.dot_dimension_numbers<[1], [0], [0], [1], [0, 0, 1, 1], [], []>} : vector<8x16xf32>, vector<16x8xf32>, vector<8x8xf32> -> vector<8x8xf32>
    %c0_7 = arith.constant 0 : index
    %c0_8 = arith.constant 0 : index
    %c0_9 = arith.constant 0 : index
    %c0_10 = arith.constant 0 : index
    %7 = vector.load %arg4[%c0_7, %c0_8, %c0_9, %c0_10] : memref<1x4x8x8xf32, #tpu.memory_space<vmem>>, vector<1x1x8x8xf32>
    %8 = vector.shape_cast %7 : vector<1x1x8x8xf32> to vector<8x8xf32>
    %9 = vector.shape_cast %6 : vector<8x8xf32> to vector<1x1x8x8xf32>
    tpu.vector_store %arg4[%c0_7, %c0_8, %c0_9, %c0_10], %9 {strides = array<i32>} : memref<1x4x8x8xf32, #tpu.memory_space<vmem>>, vector<1x1x8x8xf32>,
    %10 = vector.extract_strided_slice %3 {offsets = [16, 0], sizes = [16, 8], strides = [1, 1]} : vector<64x8xf32> to vector<16x8xf32>
    %cst_11 = arith.constant dense<0.000000e+00> : vector<8x8xf32>
    %11 = tpu.matmul %4, %10, %cst_11 {dimension_numbers = #tpu.dot_dimension_numbers<[1], [0], [0], [1], [0, 0, 1, 1], [], []>} : vector<8x16xf32>, vector<16x8xf32>, vector<8x8xf32> -> vector<8x8xf32>
    %c0_12 = arith.constant 0 : index
    %c1 = arith.constant 1 : index
    %c0_13 = arith.constant 0 : index
    %c0_14 = arith.constant 0 : index
    %12 = vector.load %arg4[%c0_12, %c1, %c0_13, %c0_14] : memref<1x4x8x8xf32, #tpu.memory_space<vmem>>, vector<1x1x8x8xf32>
    %13 = vector.shape_cast %12 : vector<1x1x8x8xf32> to vector<8x8xf32>
    %14 = vector.shape_cast %11 : vector<8x8xf32> to vector<1x1x8x8xf32>
    tpu.vector_store %arg4[%c0_12, %c1, %c0_13, %c0_14], %14 {strides = array<i32>} : memref<1x4x8x8xf32, #tpu.memory_space<vmem>>, vector<1x1x8x8xf32>,
    %15 = vector.extract_strided_slice %3 {offsets = [32, 0], sizes = [16, 8], strides = [1, 1]} : vector<64x8xf32> to vector<16x8xf32>
    %cst_15 = arith.constant dense<0.000000e+00> : vector<8x8xf32>
    %16 = tpu.matmul %4, %15, %cst_15 {dimension_numbers = #tpu.dot_dimension_numbers<[1], [0], [0], [1], [0, 0, 1, 1], [], []>} : vector<8x16xf32>, vector<16x8xf32>, vector<8x8xf32> -> vector<8x8xf32>
    %c0_16 = arith.constant 0 : index
    %c2 = arith.constant 2 : index
    %c0_17 = arith.constant 0 : index
    %c0_18 = arith.constant 0 : index
    %17 = vector.load %arg4[%c0_16, %c2, %c0_17, %c0_18] : memref<1x4x8x8xf32, #tpu.memory_space<vmem>>, vector<1x1x8x8xf32>
    %18 = vector.shape_cast %17 : vector<1x1x8x8xf32> to vector<8x8xf32>
    %19 = vector.shape_cast %16 : vector<8x8xf32> to vector<1x1x8x8xf32>
    tpu.vector_store %arg4[%c0_16, %c2, %c0_17, %c0_18], %19 {strides = array<i32>} : memref<1x4x8x8xf32, #tpu.memory_space<vmem>>, vector<1x1x8x8xf32>,
    %20 = vector.extract_strided_slice %3 {offsets = [48, 0], sizes = [16, 8], strides = [1, 1]} : vector<64x8xf32> to vector<16x8xf32>
    %cst_19 = arith.constant dense<0.000000e+00> : vector<8x8xf32>
    %21 = tpu.matmul %4, %20, %cst_19 {dimension_numbers = #tpu.dot_dimension_numbers<[1], [0], [0], [1], [0, 0, 1, 1], [], []>} : vector<8x16xf32>, vector<16x8xf32>, vector<8x8xf32> -> vector<8x8xf32>
    %c0_20 = arith.constant 0 : index
    %c3 = arith.constant 3 : index
    %c0_21 = arith.constant 0 : index
    %c0_22 = arith.constant 0 : index
    %22 = vector.load %arg4[%c0_20, %c3, %c0_21, %c0_22] : memref<1x4x8x8xf32, #tpu.memory_space<vmem>>, vector<1x1x8x8xf32>
    %23 = vector.shape_cast %22 : vector<1x1x8x8xf32> to vector<8x8xf32>
    %24 = vector.shape_cast %21 : vector<8x8xf32> to vector<1x1x8x8xf32>
    tpu.vector_store %arg4[%c0_20, %c3, %c0_21, %c0_22], %24 {strides = array<i32>} : memref<1x4x8x8xf32, #tpu.memory_space<vmem>>, vector<1x1x8x8xf32>,
    return
  }
  func.func @transform_0(%arg0: i32) -> (i32, i32) {
    %c0_i32 = arith.constant 0 : i32
    %c0_i32_0 = arith.constant 0 : i32
    %c0_i32_1 = arith.constant 0 : i32
    return %c0_i32, %c0_i32_0 : i32, i32
  }
  func.func @transform_1(%arg0: i32) -> (i32, i32) {
    %c0_i32 = arith.constant 0 : i32
    %c0_i32_0 = arith.constant 0 : i32
    %c0_i32_1 = arith.constant 0 : i32
    return %c0_i32, %c0_i32_0 : i32, i32
  }
  func.func @transform_2(%arg0: i32) -> (i32, i32, i32) {
    %c0_i32 = arith.constant 0 : i32
    %c0_i32_0 = arith.constant 0 : i32
    %c0_i32_1 = arith.constant 0 : i32
    return %arg0, %c0_i32, %c0_i32_0 : i32, i32, i32
  }
  func.func @transform_3(%arg0: i32) -> (i32, i32, i32, i32) {
    %c0_i32 = arith.constant 0 : i32
    %c0_i32_0 = arith.constant 0 : i32
    %c0_i32_1 = arith.constant 0 : i32
    %c0_i32_2 = arith.constant 0 : i32
    return %arg0, %c0_i32, %c0_i32_0, %c0_i32_1 : i32, i32, i32, i32
  }
}

</mosaic_0001>

<llo_original>
// kernel: tpu_custom_call.1
$region0: #{tpu_custom_call.1}
  #allocation0 [shape = 'u32[]', space=smem, size = 0x4, offset = 0x4, fixed_abs, tag = 'smem constant byte address 0x4 - core index']
  #allocation1 [shape = 'u32[144,128]{1,0:T(1,128)}', space=vmem, size = 0x12000, scoped, tag = 'internal scratch']
  %s0 = inlined_call_operand.vmem [shape: f32[8,16], index: 0, kind: input, shape index: {}]
  %s1 = inlined_call_operand.vmem [shape: f32[16,8], index: 1, kind: input, shape index: {}]
  %s2 = inlined_call_operand.vmem [shape: f32[2,64,16], index: 2, kind: input, shape index: {}]
  %s3 = inlined_call_operand.hbm [shape: f32[2,4,8,8], index: 3, kind: output, shape index: {}]
  %s4 = sld [smem:[#allocation0]]
  $region45: #{tpu_custom_call.1} parent=0
    _
  %s6 = ssub.s32 1, %s4
  %s7 = scalar_select 0, %s6, %s4
  $region1: #{tpu_custom_call.1} parent=0
    #allocation2 [shape = 'u8[32768]{0}', space=vmem, size = 0x8000, scoped, tag = 'output window, operand 0']
    #allocation3 [shape = 's32[2]{0}', space=sflag, size = 0x8, scoped, tag = 'scoped memory for tpu_custom_call.1']
    %8 = vsyncpa [#allocation3], 0
    %s9 = scalar_lea.sflag [#allocation3], 1
    %10 = vsyncpa %s9, 0
    loop: start=0, step=1, limit=4
    $region2: #{tpu_custom_call.1} parent=1 // loop_pre_header
      _
    $region3: #{tpu_custom_call.1} parent=1 // loop_header
      %s12 = sphi 0, %s16
      %p13 = scmp.ge.s32.totalorder %s12, 4
      %s20 = sphi 0, %s20
      %s22 = sphi 0, %s20
      %s23 = sphi 0, %s22
      %s37 = sphi 0, %s23
      %s41 = sphi 0, %s41
      %s43 = sphi 0, %s41
      %s44 = sphi 0, %s43
      %s58 = sphi 0, %s44
      %s64 = sphi 0, %s66
      %s67 = sphi 0, %s64
      %s68 = sphi 0, %s67
      %s84 = sphi 0, %s68
      %s90 = sphi 0, %s92
      %s93 = sphi 0, %s90
      %s94 = sphi 0, %s93
      %s110 = sphi 0, %s94
    $region4: #{tpu_custom_call.1} parent=1 // loop_header_branch
      %15 = sbr.rel (%p13) target = $region8
    $region5: #{tpu_custom_call.1} parent=1 // loop_body
      %s17 = ssub.s32 %s12, 1
      %s18 = ssub.s32 %s12, 2
      %s19 = sadd.s32 %s12, 1
      %s21 = sadd.s32 %s20, 1
      %p24 = scmp.eq.s32.totalorder %s12, 1
      %p25 = scmp.ne.s32.totalorder %s20, %s22
      %p26 = scmp.eq.s32.totalorder %s12, 0
      %p27 = por %p25, %p26
      %p28 = scmp.ne.s32.totalorder %s20, %s22
      %p29 = scmp.eq.s32.totalorder %s17, 1
      %p30 = por %p28, %p29
      %p31 = scmp.ne.s32.totalorder %s22, %s23
      %p32 = scmp.eq.s32.totalorder %s17, 0
      %p33 = por %p31, %p32
      %p34 = scmp.ne.s32.totalorder %s22, %s23
      %p35 = scmp.eq.s32.totalorder %s18, 1
      %p36 = por %p34, %p35
      %p38 = scmp.ne.s32.totalorder %s23, %s37
      %p39 = scmp.eq.s32.totalorder %s18, 0
      %p40 = por %p38, %p39
      %s42 = sadd.s32 %s41, 1
      %p45 = scmp.eq.s32.totalorder %s12, 1
      %p46 = scmp.ne.s32.totalorder %s41, %s43
      %p47 = scmp.eq.s32.totalorder %s12, 0
      %p48 = por %p46, %p47
      %p49 = scmp.ne.s32.totalorder %s41, %s43
      %p50 = scmp.eq.s32.totalorder %s17, 1
      %p51 = por %p49, %p50
      %p52 = scmp.ne.s32.totalorder %s43, %s44
      %p53 = scmp.eq.s32.totalorder %s17, 0
      %p54 = por %p52, %p53
      %p55 = scmp.ne.s32.totalorder %s43, %s44
      %p56 = scmp.eq.s32.totalorder %s18, 1
      %p57 = por %p55, %p56
      %p59 = scmp.ne.s32.totalorder %s44, %s58
      %p60 = scmp.eq.s32.totalorder %s18, 0
      %p61 = por %p59, %p60
      %s62 = ssub.s32 %s12, %s19
      %p63 = scmp.eq.s32.totalorder %s62, 0
      %s65 = sadd.s32 %s64, 1
      %s66 = scalar_select %p63, %s64, %s65
      %p69 = pneg %p63
      %p70 = scmp.eq.s32.totalorder %s12, 1
      %p71 = por %p69, %p70
      %p72 = scmp.ne.s32.totalorder %s64, %s67
      %p73 = scmp.eq.s32.totalorder %s12, 0
      %p74 = por %p72, %p73
      %p75 = scmp.ne.s32.totalorder %s64, %s67
      %p76 = scmp.eq.s32.totalorder %s17, 1
      %p77 = por %p75, %p76
      %p78 = scmp.ne.s32.totalorder %s67, %s68
      %p79 = scmp.eq.s32.totalorder %s17, 0
      %p80 = por %p78, %p79
      %p81 = scmp.ne.s32.totalorder %s67, %s68
      %p82 = scmp.eq.s32.totalorder %s18, 1
      %p83 = por %p81, %p82
      %p85 = scmp.ne.s32.totalorder %s68, %s84
      %p86 = scmp.eq.s32.totalorder %s18, 0
      %p87 = por %p85, %p86
      %s88 = ssub.s32 %s12, %s19
      %p89 = scmp.eq.s32.totalorder %s88, 0
      %s91 = sadd.s32 %s90, 1
      %s92 = scalar_select %p89, %s90, %s91
      %p95 = pneg %p89
      %p96 = scmp.eq.s32.totalorder %s12, 1
      %p97 = por %p95, %p96
      %p98 = scmp.ne.s32.totalorder %s90, %s93
      %p99 = scmp.eq.s32.totalorder %s12, 0
      %p100 = por %p98, %p99
      %p101 = scmp.ne.s32.totalorder %s90, %s93
      %p102 = scmp.eq.s32.totalorder %s17, 1
      %p103 = por %p101, %p102
      %p104 = scmp.ne.s32.totalorder %s93, %s94
      %p105 = scmp.eq.s32.totalorder %s17, 0
      %p106 = por %p104, %p105
      %p107 = scmp.ne.s32.totalorder %s93, %s94
      %p108 = scmp.eq.s32.totalorder %s18, 1
      %p109 = por %p107, %p108
      %p111 = scmp.ne.s32.totalorder %s94, %s110
      %p112 = scmp.eq.s32.totalorder %s18, 0
      %p113 = por %p111, %p112
      %p114 = scmp.le.s32.totalorder 1, %s12
      %p115 = scmp.lt.s32.totalorder %s12, 3
      %p116 = pnand %p114, %p115
      %p117 = pneg %p116
      // Predicated region
      $region9: #{tpu_custom_call.1} parent=5 // pred_check
        _
      $region10: #{tpu_custom_call.1} parent=5 // pred_check_branch
        %119 = sbr.rel (%p116) target = $region12
      $region11: #{tpu_custom_call.1} parent=5 // pred_region
        %s120 = ssub.s32 %s12, 1
        // Predicated region
        $region13: #{tpu_custom_call.1} parent=11 // pred_check
          %p121 = pneg %p33
        $region14: #{tpu_custom_call.1} parent=11 // pred_check_branch
          %123 = sbr.rel (%p121) target = $region16
        $region15: #{tpu_custom_call.1} parent=11 // pred_region
          _
        $region16: #{tpu_custom_call.1} parent=11 // pred_fallthru
          _
        // Predicated region
        $region17: #{tpu_custom_call.1} parent=11 // pred_check
          %p124 = pneg %p54
        $region18: #{tpu_custom_call.1} parent=11 // pred_check_branch
          %126 = sbr.rel (%p124) target = $region20
        $region19: #{tpu_custom_call.1} parent=11 // pred_region
          _
        $region20: #{tpu_custom_call.1} parent=11 // pred_fallthru
          _
      $region12: #{tpu_custom_call.1} parent=5 // pred_fallthru
        _
      %p127 = scmp.lt.s32.totalorder %s12, 2
      // Predicated region
      $region21: #{tpu_custom_call.1} parent=5 // pred_check
        %p128 = pneg %p127
      $region22: #{tpu_custom_call.1} parent=5 // pred_check_branch
        %130 = sbr.rel (%p128) target = $region24
      $region23: #{tpu_custom_call.1} parent=5 // pred_region
        // Predicated region
        $region25: #{tpu_custom_call.1} parent=23 // pred_check
          %p131 = pneg %p74
        $region26: #{tpu_custom_call.1} parent=23 // pred_check_branch
          %133 = sbr.rel (%p131) target = $region28
        $region27: #{tpu_custom_call.1} parent=23 // pred_region
          %p134 = scmp.lt.s32.totalorder %s12, 1
          %s135 = scalar_select %p134, %s12, 1
          %s136 = smul.addr %s135, 8
          %s137 = smul.addr %s136, 8
          %s138 = scalar_lea.vmem %s2, %s137
        $region28: #{tpu_custom_call.1} parent=23 // pred_fallthru
          _
      $region24: #{tpu_custom_call.1} parent=5 // pred_fallthru
        _
      %p139 = scmp.le.s32.totalorder 1, %s12
      %p140 = scmp.lt.s32.totalorder %s12, 3
      %p141 = pnand %p139, %p140
      %p142 = pneg %p141
      // Predicated region
      $region29: #{tpu_custom_call.1} parent=5 // pred_check
        _
      $region30: #{tpu_custom_call.1} parent=5 // pred_check_branch
        %144 = sbr.rel (%p141) target = $region32
      $region31: #{tpu_custom_call.1} parent=5 // pred_region
        %s145 = ssub.s32 %s12, 1
        %p146 = pneg %p33
        %p147 = pneg %p30
        %p148 = pneg %p54
        %p149 = pneg %p51
        %p150 = scmp.lt.s32.totalorder %s17, 1
        %s151 = scalar_select %p150, %s17, 1
        %s152 = smul.addr %s151, 8
        %s153 = smul.addr %s152, 8
        %s154 = scalar_lea.vmem %s2, %s153
        %p155 = pneg %p80
        %p156 = pneg %p77
        %p157 = pneg %p106
        %p158 = pneg %p103
        %s159 = sand.u32 %s93, 1
        %s160 = scalar_lea.sflag [#allocation3], %s159
        %s161 = sand.u32 %s93, 1
        %s162 = smul.addr %s161, 32
        %s163 = scalar_lea.vmem [#allocation2], %s162
        %p164 = scmp.lt.s32.totalorder %s17, 1
        %s165 = scalar_select %p164, %s17, 1
        %s166 = smul.addr %s165, 8
        %s167 = smul.addr %s166, 8
        %s168 = scalar_lea.vmem %s2, %s167
        %v169 = vld [vmem:[%s168] sm:$0xff]
        %v170 = vld [vmem:[%s168 + $0x8] sm:$0xff]
        %v171 = vld [vmem:[%s168 + $0x10] sm:$0xff]
        %v172 = vld [vmem:[%s168 + $0x18] sm:$0xff]
        %v173 = vld [vmem:[%s168 + $0x20] sm:$0xff]
        %v174 = vld [vmem:[%s168 + $0x28] sm:$0xff]
        %v175 = vld [vmem:[%s168 + $0x30] sm:$0xff]
        %v176 = vld [vmem:[%s168 + $0x38] sm:$0xff]
        %v177 = vld [vmem:[%s1] sm:$0xff]
        %v178 = vld [vmem:[%s1 + $0x8] sm:$0xff]
        %vm179 = vcmask 130048
        %v181 = vsel %vm179, %v169, 0
        %v184 = vsel %vm179, %v170, 0
        %v187 = vsel %vm179, %v171, 0
        %v190 = vsel %vm179, %v172, 0
        %v193 = vsel %vm179, %v173, 0
        %v196 = vsel %vm179, %v174, 0
        %v199 = vsel %vm179, %v175, 0
        %v202 = vsel %vm179, %v176, 0
        %204 = vmatprep.subr.mxu0 0.0
        %205 = vmatpush1.msra.mxu0 0.0
        %206 = vmatprep.subr.mxu0 0.0
        %207 = vmatpush1.msra.mxu0 0.0
        %208 = vmatprep.subr.mxu0 0.0
        %209 = vmatpush1.msra.mxu0 0.0
        %210 = vmatprep.subr.mxu0 0.0
        %211 = vmatpush1.msra.mxu0 0.0
        %212 = vmatprep.subr.mxu0 0.0
        %213 = vmatpush1.msra.mxu0 0.0
        %214 = vmatprep.subr.mxu0 0.0
        %215 = vmatpush1.msra.mxu0 0.0
        %216 = vmatprep.subr.mxu0 0.0
        %217 = vmatpush1.msra.mxu0 0.0
        %218 = vmatprep.subr.mxu0 0.0
        %219 = vmatpush1.msra.mxu0 0.0
        %220 = vmatprep.subr.mxu0 0.0
        %221 = vmatpush1.msra.mxu0 0.0
        %222 = vmatprep.subr.mxu0 0.0
        %223 = vmatpush1.msra.mxu0 0.0
        %224 = vmatprep.subr.mxu0 0.0
        %225 = vmatpush1.msra.mxu0 0.0
        %226 = vmatprep.subr.mxu0 0.0
        %227 = vmatpush1.msra.mxu0 0.0
        %228 = vmatprep.subr.mxu0 0.0
        %229 = vmatpush1.msra.mxu0 0.0
        %230 = vmatprep.subr.mxu0 0.0
        %231 = vmatpush1.msra.mxu0 0.0
        %232 = vmatprep.subr.mxu0 0.0
        %233 = vmatpush1.msra.mxu0 %v178
        %234 = vmatprep.subr.mxu0 0.0
        %235 = vmatpush1.msra.mxu0 %v177
        %236 = vmatprep.subr.mxu0 0.0
        %237 = vmatpush2.msra.mxu0 0.0
        %238 = vmatprep.subr.mxu0 0.0
        %239 = vmatpush2.msra.mxu0 0.0
        %240 = vmatprep.subr.mxu0 0.0
        %241 = vmatpush2.msra.mxu0 0.0
        %242 = vmatprep.subr.mxu0 0.0
        %243 = vmatpush2.msra.mxu0 0.0
        %244 = vmatprep.subr.mxu0 0.0
        %245 = vmatpush2.msra.mxu0 0.0
        %246 = vmatprep.subr.mxu0 0.0
        %247 = vmatpush2.msra.mxu0 0.0
        %248 = vmatprep.subr.mxu0 0.0
        %249 = vmatpush2.msra.mxu0 0.0
        %250 = vmatprep.subr.mxu0 0.0
        %251 = vmatpush2.msra.mxu0 0.0
        %252 = vmatprep.subr.mxu0 0.0
        %253 = vmatpush2.msra.mxu0 0.0
        %254 = vmatprep.subr.mxu0 0.0
        %255 = vmatpush2.msra.mxu0 0.0
        %256 = vmatprep.subr.mxu0 0.0
        %257 = vmatpush2.msra.mxu0 0.0
        %258 = vmatprep.subr.mxu0 0.0
        %259 = vmatpush2.msra.mxu0 0.0
        %260 = vmatprep.subr.mxu0 0.0
        %261 = vmatpush2.msra.mxu0 0.0
        %262 = vmatprep.subr.mxu0 0.0
        %263 = vmatpush2.msra.mxu0 0.0
        %264 = vmatprep.subr.mxu0 0.0
        %265 = vmatpush2.msra.mxu0 0.0
        %266 = vmatprep.subr.mxu0 0.0
        %267 = vmatpush2.msra.mxu0 0.0
        %268 = vmatprep.mubr.f32.mxu0 0.0
        %269 = vmatmul.mubr.f32.gmra.mxu0 %v181
        %v270 = vpop.f32.mrf.mxu0
        %v271 = vadd.f32 0.0, %v270
        %v272 = vpop.f32.mrf.mxu0
        %273 = vmatprep.mubr.f32.mxu0 0.0
        %274 = vmatmul.mubr.f32.gmra.mxu0 %v184
        %v275 = vpop.f32.mrf.mxu0
        %v276 = vadd.f32 0.0, %v275
        %v277 = vpop.f32.mrf.mxu0
        %278 = vmatprep.mubr.f32.mxu0 0.0
        %279 = vmatmul.mubr.f32.gmra.mxu0 %v187
        %v280 = vpop.f32.mrf.mxu0
        %v281 = vadd.f32 0.0, %v280
        %v282 = vpop.f32.mrf.mxu0
        %283 = vmatprep.mubr.f32.mxu0 0.0
        %284 = vmatmul.mubr.f32.gmra.mxu0 %v190
        %v285 = vpop.f32.mrf.mxu0
        %v286 = vadd.f32 0.0, %v285
        %v287 = vpop.f32.mrf.mxu0
        %288 = vmatprep.mubr.f32.mxu0 0.0
        %289 = vmatmul.mubr.f32.gmra.mxu0 %v193
        %v290 = vpop.f32.mrf.mxu0
        %v291 = vadd.f32 0.0, %v290
        %v292 = vpop.f32.mrf.mxu0
        %293 = vmatprep.mubr.f32.mxu0 0.0
        %294 = vmatmul.mubr.f32.gmra.mxu0 %v196
        %v295 = vpop.f32.mrf.mxu0
        %v296 = vadd.f32 0.0, %v295
        %v297 = vpop.f32.mrf.mxu0
        %298 = vmatprep.mubr.f32.mxu0 0.0
        %299 = vmatmul.mubr.f32.gmra.mxu0 %v199
        %v300 = vpop.f32.mrf.mxu0
        %v301 = vadd.f32 0.0, %v300
        %v302 = vpop.f32.mrf.mxu0
        %303 = vmatprep.mubr.f32.mxu0 0.0
        %304 = vmatmul.mubr.f32.gmra.mxu0 %v202
        %v305 = vpop.f32.mrf.mxu0
        %v306 = vadd.f32 0.0, %v305
        %v307 = vpop.f32.mrf.mxu0
        %308 = vdwg.mxu0
        %v309 = vld [vmem:[%s0] sm:$0xff]
        %v311 = vsel %vm179, %v309, 0
        %313 = vmatprep.subr.mxu0 0.0
        %314 = vmatpush1.msra.mxu0 0.0
        %315 = vmatprep.subr.mxu0 0.0
        %316 = vmatpush1.msra.mxu0 0.0
        %317 = vmatprep.subr.mxu0 0.0
        %318 = vmatpush1.msra.mxu0 0.0
        %319 = vmatprep.subr.mxu0 0.0
        %320 = vmatpush1.msra.mxu0 0.0
        %321 = vmatprep.subr.mxu0 0.0
        %322 = vmatpush1.msra.mxu0 0.0
        %323 = vmatprep.subr.mxu0 0.0
        %324 = vmatpush1.msra.mxu0 0.0
        %325 = vmatprep.subr.mxu0 0.0
        %326 = vmatpush1.msra.mxu0 0.0
        %327 = vmatprep.subr.mxu0 0.0
        %328 = vmatpush1.msra.mxu0 0.0
        %329 = vmatprep.subr.mxu0 0.0
        %330 = vmatpush1.msra.mxu0 0.0
        %331 = vmatprep.subr.mxu0 0.0
        %332 = vmatpush1.msra.mxu0 0.0
        %333 = vmatprep.subr.mxu0 0.0
        %334 = vmatpush1.msra.mxu0 0.0
        %335 = vmatprep.subr.mxu0 0.0
        %336 = vmatpush1.msra.mxu0 0.0
        %337 = vmatprep.subr.mxu0 0.0
        %338 = vmatpush1.msra.mxu0 0.0
        %339 = vmatprep.subr.mxu0 0.0
        %340 = vmatpush1.msra.mxu0 0.0
        %341 = vmatprep.subr.mxu0 0.0
        %342 = vmatpush1.msra.mxu0 %v276
        %343 = vmatprep.subr.mxu0 0.0
        %344 = vmatpush1.msra.mxu0 %v271
        %345 = vmatprep.subr.mxu0 0.0
        %346 = vmatpush2.msra.mxu0 0.0
        %347 = vmatprep.subr.mxu0 0.0
        %348 = vmatpush2.msra.mxu0 0.0
        %349 = vmatprep.subr.mxu0 0.0
        %350 = vmatpush2.msra.mxu0 0.0
        %351 = vmatprep.subr.mxu0 0.0
        %352 = vmatpush2.msra.mxu0 0.0
        %353 = vmatprep.subr.mxu0 0.0
        %354 = vmatpush2.msra.mxu0 0.0
        %355 = vmatprep.subr.mxu0 0.0
        %356 = vmatpush2.msra.mxu0 0.0
        %357 = vmatprep.subr.mxu0 0.0
        %358 = vmatpush2.msra.mxu0 0.0
        %359 = vmatprep.subr.mxu0 0.0
        %360 = vmatpush2.msra.mxu0 0.0
        %361 = vmatprep.subr.mxu0 0.0
        %362 = vmatpush2.msra.mxu0 0.0
        %363 = vmatprep.subr.mxu0 0.0
        %364 = vmatpush2.msra.mxu0 0.0
        %365 = vmatprep.subr.mxu0 0.0
        %366 = vmatpush2.msra.mxu0 0.0
        %367 = vmatprep.subr.mxu0 0.0
        %368 = vmatpush2.msra.mxu0 0.0
        %369 = vmatprep.subr.mxu0 0.0
        %370 = vmatpush2.msra.mxu0 0.0
        %371 = vmatprep.subr.mxu0 0.0
        %372 = vmatpush2.msra.mxu0 0.0
        %373 = vmatprep.subr.mxu0 0.0
        %374 = vmatpush2.msra.mxu0 0.0
        %375 = vmatprep.subr.mxu0 0.0
        %376 = vmatpush2.msra.mxu0 0.0
        %377 = vmatprep.mubr.f32.mxu0 0.0
        %378 = vmatmul.mubr.f32.gmra.mxu0 %v311
        %v379 = vpop.f32.mrf.mxu0
        %v380 = vadd.f32 0.0, %v379
        %v381 = vpop.f32.mrf.mxu0
        %382 = vdwg.mxu0
        %vm383 = vcmask 64512
        %384 = vst.msk [vmem:[%s163] sm:$0xff] %vm383, %v380
        %385 = vmatprep.subr.mxu0 0.0
        %386 = vmatpush1.msra.mxu0 0.0
        %387 = vmatprep.subr.mxu0 0.0
        %388 = vmatpush1.msra.mxu0 0.0
        %389 = vmatprep.subr.mxu0 0.0
        %390 = vmatpush1.msra.mxu0 0.0
        %391 = vmatprep.subr.mxu0 0.0
        %392 = vmatpush1.msra.mxu0 0.0
        %393 = vmatprep.subr.mxu0 0.0
        %394 = vmatpush1.msra.mxu0 0.0
        %395 = vmatprep.subr.mxu0 0.0
        %396 = vmatpush1.msra.mxu0 0.0
        %397 = vmatprep.subr.mxu0 0.0
        %398 = vmatpush1.msra.mxu0 0.0
        %399 = vmatprep.subr.mxu0 0.0
        %400 = vmatpush1.msra.mxu0 0.0
        %401 = vmatprep.subr.mxu0 0.0
        %402 = vmatpush1.msra.mxu0 0.0
        %403 = vmatprep.subr.mxu0 0.0
        %404 = vmatpush1.msra.mxu0 0.0
        %405 = vmatprep.subr.mxu0 0.0
        %406 = vmatpush1.msra.mxu0 0.0
        %407 = vmatprep.subr.mxu0 0.0
        %408 = vmatpush1.msra.mxu0 0.0
        %409 = vmatprep.subr.mxu0 0.0
        %410 = vmatpush1.msra.mxu0 0.0
        %411 = vmatprep.subr.mxu0 0.0
        %412 = vmatpush1.msra.mxu0 0.0
        %413 = vmatprep.subr.mxu0 0.0
        %414 = vmatpush1.msra.mxu0 %v286
        %415 = vmatprep.subr.mxu0 0.0
        %416 = vmatpush1.msra.mxu0 %v281
        %417 = vmatprep.subr.mxu0 0.0
        %418 = vmatpush2.msra.mxu0 0.0
        %419 = vmatprep.subr.mxu0 0.0
        %420 = vmatpush2.msra.mxu0 0.0
        %421 = vmatprep.subr.mxu0 0.0
        %422 = vmatpush2.msra.mxu0 0.0
        %423 = vmatprep.subr.mxu0 0.0
        %424 = vmatpush2.msra.mxu0 0.0
        %425 = vmatprep.subr.mxu0 0.0
        %426 = vmatpush2.msra.mxu0 0.0
        %427 = vmatprep.subr.mxu0 0.0
        %428 = vmatpush2.msra.mxu0 0.0
        %429 = vmatprep.subr.mxu0 0.0
        %430 = vmatpush2.msra.mxu0 0.0
        %431 = vmatprep.subr.mxu0 0.0
        %432 = vmatpush2.msra.mxu0 0.0
        %433 = vmatprep.subr.mxu0 0.0
        %434 = vmatpush2.msra.mxu0 0.0
        %435 = vmatprep.subr.mxu0 0.0
        %436 = vmatpush2.msra.mxu0 0.0
        %437 = vmatprep.subr.mxu0 0.0
        %438 = vmatpush2.msra.mxu0 0.0
        %439 = vmatprep.subr.mxu0 0.0
        %440 = vmatpush2.msra.mxu0 0.0
        %441 = vmatprep.subr.mxu0 0.0
        %442 = vmatpush2.msra.mxu0 0.0
        %443 = vmatprep.subr.mxu0 0.0
        %444 = vmatpush2.msra.mxu0 0.0
        %445 = vmatprep.subr.mxu0 0.0
        %446 = vmatpush2.msra.mxu0 0.0
        %447 = vmatprep.subr.mxu0 0.0
        %448 = vmatpush2.msra.mxu0 0.0
        %449 = vmatprep.mubr.f32.mxu0 0.0
        %450 = vmatmul.mubr.f32.gmra.mxu0 %v311
        %v451 = vpop.f32.mrf.mxu0
        %v452 = vadd.f32 0.0, %v451
        %v453 = vpop.f32.mrf.mxu0
        %454 = vdwg.mxu0
        %s455 = scalar_lea.vmem %s163, 8 [#allocation2]
        %456 = vst.msk [vmem:[%s455] sm:$0xff] %vm383, %v452
        %457 = vmatprep.subr.mxu0 0.0
        %458 = vmatpush1.msra.mxu0 0.0
        %459 = vmatprep.subr.mxu0 0.0
        %460 = vmatpush1.msra.mxu0 0.0
        %461 = vmatprep.subr.mxu0 0.0
        %462 = vmatpush1.msra.mxu0 0.0
        %463 = vmatprep.subr.mxu0 0.0
        %464 = vmatpush1.msra.mxu0 0.0
        %465 = vmatprep.subr.mxu0 0.0
        %466 = vmatpush1.msra.mxu0 0.0
        %467 = vmatprep.subr.mxu0 0.0
        %468 = vmatpush1.msra.mxu0 0.0
        %469 = vmatprep.subr.mxu0 0.0
        %470 = vmatpush1.msra.mxu0 0.0
        %471 = vmatprep.subr.mxu0 0.0
        %472 = vmatpush1.msra.mxu0 0.0
        %473 = vmatprep.subr.mxu0 0.0
        %474 = vmatpush1.msra.mxu0 0.0
        %475 = vmatprep.subr.mxu0 0.0
        %476 = vmatpush1.msra.mxu0 0.0
        %477 = vmatprep.subr.mxu0 0.0
        %478 = vmatpush1.msra.mxu0 0.0
        %479 = vmatprep.subr.mxu0 0.0
        %480 = vmatpush1.msra.mxu0 0.0
        %481 = vmatprep.subr.mxu0 0.0
        %482 = vmatpush1.msra.mxu0 0.0
        %483 = vmatprep.subr.mxu0 0.0
        %484 = vmatpush1.msra.mxu0 0.0
        %485 = vmatprep.subr.mxu0 0.0
        %486 = vmatpush1.msra.mxu0 %v296
        %487 = vmatprep.subr.mxu0 0.0
        %488 = vmatpush1.msra.mxu0 %v291
        %489 = vmatprep.subr.mxu0 0.0
        %490 = vmatpush2.msra.mxu0 0.0
        %491 = vmatprep.subr.mxu0 0.0
        %492 = vmatpush2.msra.mxu0 0.0
        %493 = vmatprep.subr.mxu0 0.0
        %494 = vmatpush2.msra.mxu0 0.0
        %495 = vmatprep.subr.mxu0 0.0
        %496 = vmatpush2.msra.mxu0 0.0
        %497 = vmatprep.subr.mxu0 0.0
        %498 = vmatpush2.msra.mxu0 0.0
        %499 = vmatprep.subr.mxu0 0.0
        %500 = vmatpush2.msra.mxu0 0.0
        %501 = vmatprep.subr.mxu0 0.0
        %502 = vmatpush2.msra.mxu0 0.0
        %503 = vmatprep.subr.mxu0 0.0
        %504 = vmatpush2.msra.mxu0 0.0
        %505 = vmatprep.subr.mxu0 0.0
        %506 = vmatpush2.msra.mxu0 0.0
        %507 = vmatprep.subr.mxu0 0.0
        %508 = vmatpush2.msra.mxu0 0.0
        %509 = vmatprep.subr.mxu0 0.0
        %510 = vmatpush2.msra.mxu0 0.0
        %511 = vmatprep.subr.mxu0 0.0
        %512 = vmatpush2.msra.mxu0 0.0
        %513 = vmatprep.subr.mxu0 0.0
        %514 = vmatpush2.msra.mxu0 0.0
        %515 = vmatprep.subr.mxu0 0.0
        %516 = vmatpush2.msra.mxu0 0.0
        %517 = vmatprep.subr.mxu0 0.0
        %518 = vmatpush2.msra.mxu0 0.0
        %519 = vmatprep.subr.mxu0 0.0
        %520 = vmatpush2.msra.mxu0 0.0
        %521 = vmatprep.mubr.f32.mxu0 0.0
        %522 = vmatmul.mubr.f32.gmra.mxu0 %v311
        %v523 = vpop.f32.mrf.mxu0
        %v524 = vadd.f32 0.0, %v523
        %v525 = vpop.f32.mrf.mxu0
        %526 = vdwg.mxu0
        %s527 = scalar_lea.vmem %s163, 16 [#allocation2]
        %528 = vst.msk [vmem:[%s527] sm:$0xff] %vm383, %v524
        %529 = vmatprep.subr.mxu0 0.0
        %530 = vmatpush1.msra.mxu0 0.0
        %531 = vmatprep.subr.mxu0 0.0
        %532 = vmatpush1.msra.mxu0 0.0
        %533 = vmatprep.subr.mxu0 0.0
        %534 = vmatpush1.msra.mxu0 0.0
        %535 = vmatprep.subr.mxu0 0.0
        %536 = vmatpush1.msra.mxu0 0.0
        %537 = vmatprep.subr.mxu0 0.0
        %538 = vmatpush1.msra.mxu0 0.0
        %539 = vmatprep.subr.mxu0 0.0
        %540 = vmatpush1.msra.mxu0 0.0
        %541 = vmatprep.subr.mxu0 0.0
        %542 = vmatpush1.msra.mxu0 0.0
        %543 = vmatprep.subr.mxu0 0.0
        %544 = vmatpush1.msra.mxu0 0.0
        %545 = vmatprep.subr.mxu0 0.0
        %546 = vmatpush1.msra.mxu0 0.0
        %547 = vmatprep.subr.mxu0 0.0
        %548 = vmatpush1.msra.mxu0 0.0
        %549 = vmatprep.subr.mxu0 0.0
        %550 = vmatpush1.msra.mxu0 0.0
        %551 = vmatprep.subr.mxu0 0.0
        %552 = vmatpush1.msra.mxu0 0.0
        %553 = vmatprep.subr.mxu0 0.0
        %554 = vmatpush1.msra.mxu0 0.0
        %555 = vmatprep.subr.mxu0 0.0
        %556 = vmatpush1.msra.mxu0 0.0
        %557 = vmatprep.subr.mxu0 0.0
        %558 = vmatpush1.msra.mxu0 %v306
        %559 = vmatprep.subr.mxu0 0.0
        %560 = vmatpush1.msra.mxu0 %v301
        %561 = vmatprep.subr.mxu0 0.0
        %562 = vmatpush2.msra.mxu0 0.0
        %563 = vmatprep.subr.mxu0 0.0
        %564 = vmatpush2.msra.mxu0 0.0
        %565 = vmatprep.subr.mxu0 0.0
        %566 = vmatpush2.msra.mxu0 0.0
        %567 = vmatprep.subr.mxu0 0.0
        %568 = vmatpush2.msra.mxu0 0.0
        %569 = vmatprep.subr.mxu0 0.0
        %570 = vmatpush2.msra.mxu0 0.0
        %571 = vmatprep.subr.mxu0 0.0
        %572 = vmatpush2.msra.mxu0 0.0
        %573 = vmatprep.subr.mxu0 0.0
        %574 = vmatpush2.msra.mxu0 0.0
        %575 = vmatprep.subr.mxu0 0.0
        %576 = vmatpush2.msra.mxu0 0.0
        %577 = vmatprep.subr.mxu0 0.0
        %578 = vmatpush2.msra.mxu0 0.0
        %579 = vmatprep.subr.mxu0 0.0
        %580 = vmatpush2.msra.mxu0 0.0
        %581 = vmatprep.subr.mxu0 0.0
        %582 = vmatpush2.msra.mxu0 0.0
        %583 = vmatprep.subr.mxu0 0.0
        %584 = vmatpush2.msra.mxu0 0.0
        %585 = vmatprep.subr.mxu0 0.0
        %586 = vmatpush2.msra.mxu0 0.0
        %587 = vmatprep.subr.mxu0 0.0
        %588 = vmatpush2.msra.mxu0 0.0
        %589 = vmatprep.subr.mxu0 0.0
        %590 = vmatpush2.msra.mxu0 0.0
        %591 = vmatprep.subr.mxu0 0.0
        %592 = vmatpush2.msra.mxu0 0.0
        %593 = vmatprep.mubr.f32.mxu0 0.0
        %594 = vmatmul.mubr.f32.gmra.mxu0 %v311
        %v595 = vpop.f32.mrf.mxu0
        %v596 = vadd.f32 0.0, %v595
        %v597 = vpop.f32.mrf.mxu0
        %598 = vdwg.mxu0
        %s599 = scalar_lea.vmem %s163, 24 [#allocation2]
        %600 = vst.msk [vmem:[%s599] sm:$0xff] %vm383, %v596
        %s601 = sand.u32 %s93, 1
        %s602 = scalar_lea.sflag [#allocation3], %s601
        %s603 = sand.u32 %s93, 1
        %s604 = smul.addr %s603, 32
        %s605 = scalar_lea.vmem [#allocation2], %s604
        // Predicated region
        $region33: #{tpu_custom_call.1} parent=31 // pred_check
          %p606 = pneg %p103
        $region34: #{tpu_custom_call.1} parent=31 // pred_check_branch
          %608 = sbr.rel (%p606) target = $region36
        $region35: #{tpu_custom_call.1} parent=31 // pred_region
          %s610 = ssub.s32 512, 512
          %611 = vsyncadd %s602, %s610
          %s612 = smul.addr %s17, 4
          %s613 = smul.addr %s612, 128
          %s614 = scalar_lea.hbm %s3, %s613
          %s615 = sshll.u32 %s605, 4
          %s616 = int_to_ptr.vmem [resolvable:$true] %s615
          %621 = dma.vmem_to_hbm [thread:$0]  %s616, 512, %s614, %s602, 128, 128, 8
        $region36: #{tpu_custom_call.1} parent=31 // pred_fallthru
          _
      $region32: #{tpu_custom_call.1} parent=5 // pred_fallthru
        _
      %p622 = scmp.le.s32.totalorder 2, %s12
      // Predicated region
      $region37: #{tpu_custom_call.1} parent=5 // pred_check
        %p623 = pneg %p622
      $region38: #{tpu_custom_call.1} parent=5 // pred_check_branch
        %625 = sbr.rel (%p623) target = $region40
      $region39: #{tpu_custom_call.1} parent=5 // pred_region
        %s626 = ssub.s32 %s12, 2
        // Predicated region
        $region41: #{tpu_custom_call.1} parent=39 // pred_check
          %p627 = pneg %p109
        $region42: #{tpu_custom_call.1} parent=39 // pred_check_branch
          %629 = sbr.rel (%p627) target = $region44
        $region43: #{tpu_custom_call.1} parent=39 // pred_region
          %s630 = sand.u32 %s94, 1
          %s631 = scalar_lea.sflag [#allocation3], %s630
          %s632 = sand.u32 %s94, 1
          %s633 = smul.addr %s632, 32
          %s634 = scalar_lea.vmem [#allocation2], %s633
          %635 = dma.done %s631, 512
        $region44: #{tpu_custom_call.1} parent=39 // pred_fallthru
          _
      $region40: #{tpu_custom_call.1} parent=5 // pred_fallthru
        _
    $region6: #{tpu_custom_call.1} parent=1 // loop_footer
      %s16 = sadd.s32 1, %s12
    $region7: #{tpu_custom_call.1} parent=1 // loop_footer_branch
      %11 = sbr.rel target = $region3
    $region8: #{tpu_custom_call.1} parent=1 // loop_exit
      _
    %636 = vsyncpa [#allocation3], 1
    %s637 = scalar_lea.sflag [#allocation3], 1
    %638 = vsyncpa %s637, 1

</llo_original>
